<compile_context>
chip_gen: v6e
topology: v6e:2x2x1
jax: 0.10.0
libtpu: 0.0.40
codegen_flags: <defaults>
</compile_context>

<pallas_src>
import functools

import jax
import jax.numpy as jnp
from jax.experimental import pallas as pl
from jax.experimental.pallas import tpu as pltpu


def _round_up(x: int, m: int) -> int:
    return ((x + m - 1) // m) * m


def mlp_kernel(x_ref, w1_ref, w2_ref, b2_ref, w3_ref, b3_ref, o_ref):
    # x_ref: (4, Bt) feature-major tile — rows 0..2 are the input features,
    # row 3 is a constant 1 (fc1 bias fold).  Batch sits on the 128-lane axis.
    x = x_ref[...]

    # fc1 (+ bias via augmented column) + relu : (32, 4) @ (4, Bt) on the MXU.
    h1 = jnp.maximum(
        jnp.dot(w1_ref[...], x, preferred_element_type=jnp.float32), 0.0)

    # fc2 + bias + relu : (32, 32) @ (32, Bt) on the MXU.
    h2 = jnp.maximum(
        jnp.dot(w2_ref[...], h1, preferred_element_type=jnp.float32)
        + b2_ref[...], 0.0)

    # fc3 : 32 -> 1 on the MXU (it is otherwise idle): (1, 32) @ (32, Bt).
    o = jnp.dot(w3_ref[...], h2, preferred_element_type=jnp.float32) + b3_ref[...]

    o_ref[...] = o.astype(o_ref.dtype)  # (1, Bt), lane-dense store


@functools.partial(jax.jit, static_argnames=("block_b",))
def net_forward(x, packed, *, block_b: int = 16384):
    """x: (B, 3) float32 -> (B, 1) float32, matching PyTorch Net.forward.

    `packed` is the kernel-layout parameter dict from `pack_params`.
    """
    B = x.shape[0]
    w1a = packed["w1_aug"]   # (32, 4)  = [W1 | b1]
    w2 = packed["w2"]        # (32, 32)
    b2 = packed["b2"]        # (32, 1)
    w3 = packed["w3"]        # (1, 32)  row
    b3 = packed["b3"]        # (1, 1)

    # ---- batch tiling ------------------------------------------------------
    B128 = _round_up(B, 128)             # lane-aligned batch
    Bt = max(128, min(block_b, B128))
    # v7x: keep >= 2 grid steps when possible so both TensorCores get work.
    if B128 >= 256 and pl.cdiv(B128, Bt) < 2:
        Bt = _round_up((B128 + 1) // 2, 128)
    Bp = _round_up(B128, Bt)             # padded batch, multiple of Bt
    grid = (Bp // Bt,)

    # ---- feature-major augmented input: (4, Bp) = [x.T ; ones], zero-padded.
    ones = jnp.ones((B, 1), x.dtype)
    x_aug = jnp.concatenate([x, ones], axis=1)            # (B, 4)
    x_t = jnp.pad(x_aug.T, ((0, 0), (0, Bp - B)))         # (4, Bp)

    # Weights/biases: constant block index across the grid -> stay resident
    # in VMEM (no per-step DMA).
    resident = lambda shape: pl.BlockSpec(shape, lambda i: (0, 0))

    out_t = pl.pallas_call(
        mlp_kernel,
        out_shape=jax.ShapeDtypeStruct((1, Bp), jnp.float32),
        grid=grid,
        in_specs=[
            pl.BlockSpec((4, Bt), lambda i: (0, i)),   # x tile (features + 1s)
            resident((32, 4)),                         # w1_aug
            resident((32, 32)),                        # w2
            resident((32, 1)),                         # b2
            resident((1, 32)),                         # w3 row
            resident((1, 1)),                          # b3
        ],
        out_specs=pl.BlockSpec((1, Bt), lambda i: (0, i)),  # lane-dense output
        compiler_params=pltpu.CompilerParams(
            dimension_semantics=("parallel",),  # v7x: shard batch over 2 TCs
        ),
    )(x_t, w1a, w2, b2, w3, b3)

    # Back to PyTorch's (B, 1) batch-major output; drop batch padding.
    return out_t[0, :B][:, None]


def init_params(key):
    """Deterministic init mimicking PyTorch nn.Linear default
    (U[-1/sqrt(fan_in), 1/sqrt(fan_in)]), in PyTorch layout:
    W as (out_features, in_features), b as (out_features,)."""
    def linear_init(k, fan_in, fan_out):
        kw, kb = jax.random.split(k)
        bound = 1.0 / jnp.sqrt(jnp.float32(fan_in))
        w = jax.random.uniform(kw, (fan_out, fan_in), jnp.float32, -bound, bound)
        b = jax.random.uniform(kb, (fan_out,), jnp.float32, -bound, bound)
        return w, b

    k1, k2, k3 = jax.random.split(key, 3)
    w1, b1 = linear_init(k1, 3, 32)    # (32, 3), (32,)
    w2, b2 = linear_init(k2, 32, 32)   # (32, 32), (32,)
    w3, b3 = linear_init(k3, 32, 1)    # (1, 32), (1,)
    return {"w1": w1, "b1": b1, "w2": w2, "b2": b2, "w3": w3, "b3": b3}


def pack_params(params):
    """One-time repack into the feature-major kernel layout
    (fc1 bias folded into W1 as an extra input column)."""
    return {
        "w1_aug": jnp.concatenate(
            [params["w1"], params["b1"][:, None]], axis=1),   # (32, 4)
        "w2": params["w2"],                                    # (32, 32)
        "b2": params["b2"][:, None],                           # (32, 1)
        "w3": params["w3"],                                    # (1, 32)
        "b3": params["b3"][:, None],                           # (1, 1)
    }


def net_forward_ref(x, params):
    """Pure-JAX reference, identical math to torch Net.forward."""
    h = jnp.maximum(x @ params["w1"].T + params["b1"], 0.0)   # (B, 32)
    h = jnp.maximum(h @ params["w2"].T + params["b2"], 0.0)   # (B, 32)
    return h @ params["w3"].T + params["b3"]                  # (B, 1)


if __name__ == "__main__":
    key = jax.random.PRNGKey(0)
    k_params, k_x = jax.random.split(key)

    params = init_params(k_params)
    packed = pack_params(params)
    x = jax.random.normal(k_x, (8, 3), jnp.float32)   # batch=8, 3 input features

    out = jax.block_until_ready(net_forward(x, packed))
    ref = net_forward_ref(x, params)

    assert out.shape == (8, 1), out.shape
    assert jnp.allclose(out, ref, atol=1e-4, rtol=1e-4), (out, ref)
    print("KERNEL_OK")
</pallas_src>

<mosaic_0001>
module attributes {stable_mosaic.version = 11 : i64} {
  func.func @mlp_kernel(%arg0: i32, %arg1: memref<4x128xf32, #tpu.memory_space<vmem>>, %arg2: memref<32x4xf32, #tpu.memory_space<vmem>>, %arg3: memref<32x32xf32, #tpu.memory_space<vmem>>, %arg4: memref<32x1xf32, #tpu.memory_space<vmem>>, %arg5: memref<1x32xf32, #tpu.memory_space<vmem>>, %arg6: memref<1x1xf32, #tpu.memory_space<vmem>>, %arg7: memref<1x128xf32, #tpu.memory_space<vmem>>) attributes {dimension_semantics = [#tpu.dimension_semantics<parallel>], iteration_bounds = array<i64: 1>, scalar_prefetch = 0 : i64, scratch_operands = 0 : i64, tpu.core_type = #tpu.core_type<tc>, window_params = [{transform_indices = @transform_0, window_bounds = array<i64: 4, 128>}, {pipeline_mode = #tpu.pipeline_mode<synchronous>, transform_indices = @transform_1, window_bounds = array<i64: 32, 4>}, {pipeline_mode = #tpu.pipeline_mode<synchronous>, transform_indices = @transform_2, window_bounds = array<i64: 32, 32>}, {pipeline_mode = #tpu.pipeline_mode<synchronous>, transform_indices = @transform_3, window_bounds = array<i64: 32, 1>}, {pipeline_mode = #tpu.pipeline_mode<synchronous>, transform_indices = @transform_4, window_bounds = array<i64: 1, 32>}, {pipeline_mode = #tpu.pipeline_mode<synchronous>, transform_indices = @transform_5, window_bounds = array<i64: 1, 1>}, {transform_indices = @transform_6, window_bounds = array<i64: 1, 128>}]} {
    %c0 = arith.constant 0 : index
    %c0_0 = arith.constant 0 : index
    %0 = vector.load %arg1[%c0, %c0_0] : memref<4x128xf32, #tpu.memory_space<vmem>>, vector<4x128xf32>
    %c0_1 = arith.constant 0 : index
    %c0_2 = arith.constant 0 : index
    %1 = vector.load %arg2[%c0_1, %c0_2] : memref<32x4xf32, #tpu.memory_space<vmem>>, vector<32x4xf32>
    %cst = arith.constant dense<0.000000e+00> : vector<32x128xf32>
    %2 = tpu.matmul %1, %0, %cst {dimension_numbers = #tpu.dot_dimension_numbers<[1], [0], [0], [1], [0, 0, 1, 1], [], []>} : vector<32x4xf32>, vector<4x128xf32>, vector<32x128xf32> -> vector<32x128xf32>
    %cst_3 = arith.constant 0.000000e+00 : f32
    %3 = vector.broadcast %cst_3 : f32 to vector<32x128xf32>
    %4 = arith.maximumf %2, %3 : vector<32x128xf32>
    %c0_4 = arith.constant 0 : index
    %c0_5 = arith.constant 0 : index
    %5 = vector.load %arg3[%c0_4, %c0_5] : memref<32x32xf32, #tpu.memory_space<vmem>>, vector<32x32xf32>
    %cst_6 = arith.constant dense<0.000000e+00> : vector<32x128xf32>
    %6 = tpu.matmul %5, %4, %cst_6 {dimension_numbers = #tpu.dot_dimension_numbers<[1], [0], [0], [1], [0, 0, 1, 1], [], []>} : vector<32x32xf32>, vector<32x128xf32>, vector<32x128xf32> -> vector<32x128xf32>
    %c0_7 = arith.constant 0 : index
    %c0_8 = arith.constant 0 : index
    %7 = vector.load %arg4[%c0_7, %c0_8] : memref<32x1xf32, #tpu.memory_space<vmem>>, vector<32x1xf32>
    %8 = vector.broadcast %7 : vector<32x1xf32> to vector<32x128xf32>
    %9 = arith.addf %6, %8 : vector<32x128xf32>
    %cst_9 = arith.constant 0.000000e+00 : f32
    %10 = vector.broadcast %cst_9 : f32 to vector<32x128xf32>
    %11 = arith.maximumf %9, %10 : vector<32x128xf32>
    %c0_10 = arith.constant 0 : index
    %c0_11 = arith.constant 0 : index
    %12 = vector.load %arg5[%c0_10, %c0_11] : memref<1x32xf32, #tpu.memory_space<vmem>>, vector<1x32xf32>
    %cst_12 = arith.constant dense<0.000000e+00> : vector<1x128xf32>
    %13 = tpu.matmul %12, %11, %cst_12 {dimension_numbers = #tpu.dot_dimension_numbers<[1], [0], [0], [1], [0, 0, 1, 1], [], []>} : vector<1x32xf32>, vector<32x128xf32>, vector<1x128xf32> -> vector<1x128xf32>
    %c0_13 = arith.constant 0 : index
    %c0_14 = arith.constant 0 : index
    %14 = vector.load %arg6[%c0_13, %c0_14] : memref<1x1xf32, #tpu.memory_space<vmem>>, vector<1x1xf32>
    %15 = vector.broadcast %14 : vector<1x1xf32> to vector<1x128xf32>
    %16 = arith.addf %13, %15 : vector<1x128xf32>
    %c0_15 = arith.constant 0 : index
    %c0_16 = arith.constant 0 : index
    %17 = vector.load %arg7[%c0_15, %c0_16] : memref<1x128xf32, #tpu.memory_space<vmem>>, vector<1x128xf32>
    tpu.vector_store %arg7[%c0_15, %c0_16], %16 {strides = array<i32>} : memref<1x128xf32, #tpu.memory_space<vmem>>, vector<1x128xf32>,
    return
  }
  func.func @transform_0(%arg0: i32) -> (i32, i32) {
    %c0_i32 = arith.constant 0 : i32
    %c0_i32_0 = arith.constant 0 : i32
    return %c0_i32, %arg0 : i32, i32
  }
  func.func @transform_1(%arg0: i32) -> (i32, i32) {
    %c0_i32 = arith.constant 0 : i32
    %c0_i32_0 = arith.constant 0 : i32
    %c0_i32_1 = arith.constant 0 : i32
    return %c0_i32, %c0_i32_0 : i32, i32
  }
  func.func @transform_2(%arg0: i32) -> (i32, i32) {
    %c0_i32 = arith.constant 0 : i32
    %c0_i32_0 = arith.constant 0 : i32
    %c0_i32_1 = arith.constant 0 : i32
    return %c0_i32, %c0_i32_0 : i32, i32
  }
  func.func @transform_3(%arg0: i32) -> (i32, i32) {
    %c0_i32 = arith.constant 0 : i32
    %c0_i32_0 = arith.constant 0 : i32
    %c0_i32_1 = arith.constant 0 : i32
    return %c0_i32, %c0_i32_0 : i32, i32
  }
  func.func @transform_4(%arg0: i32) -> (i32, i32) {
    %c0_i32 = arith.constant 0 : i32
    %c0_i32_0 = arith.constant 0 : i32
    %c0_i32_1 = arith.constant 0 : i32
    return %c0_i32, %c0_i32_0 : i32, i32
  }
  func.func @transform_5(%arg0: i32) -> (i32, i32) {
    %c0_i32 = arith.constant 0 : i32
    %c0_i32_0 = arith.constant 0 : i32
    %c0_i32_1 = arith.constant 0 : i32
    return %c0_i32, %c0_i32_0 : i32, i32
  }
  func.func @transform_6(%arg0: i32) -> (i32, i32) {
    %c0_i32 = arith.constant 0 : i32
    %c0_i32_0 = arith.constant 0 : i32
    return %c0_i32, %arg0 : i32, i32
  }
}

</mosaic_0001>

<llo_original>
// kernel: net_forward.1
$region0: #{net_forward.1}
  #allocation0 [shape = 'u32[]', space=smem, size = 0x4, offset = 0x4, fixed_abs, tag = 'smem constant byte address 0x4 - core index']
  #allocation1 [shape = 'u32[144,128]{1,0:T(1,128)}', space=vmem, size = 0x12000, scoped, tag = 'internal scratch']
  #allocation2 [shape = 'f32[1,1]{1,0:T(1,128)S(1)}', space=vmem, size = 0x200, scoped, tag = 'scoped memory for net_forward.1']
  %s0 = inlined_call_operand.vmem [shape: f32[4,128], index: 0, kind: input, shape index: {}]
  %s1 = inlined_call_operand.vmem [shape: f32[32,4], index: 1, kind: input, shape index: {}]
  %s2 = inlined_call_operand.vmem [shape: f32[32,32], index: 2, kind: input, shape index: {}]
  %s3 = inlined_call_operand.vmem [shape: f32[32,1], index: 3, kind: input, shape index: {}]
  %s4 = inlined_call_operand.vmem [shape: f32[1,32], index: 4, kind: input, shape index: {}]
  %s5 = inlined_call_operand.<no memory space> [shape: f32[1,1], index: 5, kind: input, shape index: {}]
  %s6 = inlined_call_operand.vmem [shape: f32[1,128], index: 6, kind: output, shape index: {}]
  %s7 = sld [smem:[#allocation0]]
  $region34: #{net_forward.1} parent=0
    _
  %s9 = ssub.s32 1, %s7
  %s10 = scalar_select 0, %s9, %s7
  %v11 = vstv %s5
  %12 = vst [vmem:[#allocation2] sm:$0x1] %v11
  // Predicated region
  $region2: #{net_forward.1} parent=0 // pred_check
    _
  $region3: #{net_forward.1} parent=0 // pred_check_branch
    %14 = sbr.rel (0) target = $region5
  $region4: #{net_forward.1} parent=0 // pred_region
    _
  $region5: #{net_forward.1} parent=0 // pred_fallthru
    _
  // Predicated region
  $region6: #{net_forward.1} parent=0 // pred_check
    _
  $region7: #{net_forward.1} parent=0 // pred_check_branch
    %16 = sbr.rel (0) target = $region9
  $region8: #{net_forward.1} parent=0 // pred_region
    _
  $region9: #{net_forward.1} parent=0 // pred_fallthru
    _
  // Predicated region
  $region10: #{net_forward.1} parent=0 // pred_check
    _
  $region11: #{net_forward.1} parent=0 // pred_check_branch
    %18 = sbr.rel (0) target = $region13
  $region12: #{net_forward.1} parent=0 // pred_region
    _
  $region13: #{net_forward.1} parent=0 // pred_fallthru
    _
  // Predicated region
  $region14: #{net_forward.1} parent=0 // pred_check
    _
  $region15: #{net_forward.1} parent=0 // pred_check_branch
    %20 = sbr.rel (0) target = $region17
  $region16: #{net_forward.1} parent=0 // pred_region
    _
  $region17: #{net_forward.1} parent=0 // pred_fallthru
    _
  // Predicated region
  $region18: #{net_forward.1} parent=0 // pred_check
    _
  $region19: #{net_forward.1} parent=0 // pred_check_branch
    %22 = sbr.rel (0) target = $region21
  $region20: #{net_forward.1} parent=0 // pred_region
    _
  $region21: #{net_forward.1} parent=0 // pred_fallthru
    _
  // Predicated region
  $region22: #{net_forward.1} parent=0 // pred_check
    _
  $region23: #{net_forward.1} parent=0 // pred_check_branch
    %24 = sbr.rel (0) target = $region25
  $region24: #{net_forward.1} parent=0 // pred_region
    _
  $region25: #{net_forward.1} parent=0 // pred_fallthru
    _
  %v25 = vld [vmem:[%s0] sm:$0xf]
  %v26 = vld [vmem:[%s1] sm:$0xff]
  %v27 = vld [vmem:[%s1 + $0x8] sm:$0xff]
  %v28 = vld [vmem:[%s1 + $0x10] sm:$0xff]
  %v29 = vld [vmem:[%s1 + $0x18] sm:$0xff]
  %vm30 = vcmask 31744
  %v32 = vsel %vm30, %v26, 0
  %v35 = vsel %vm30, %v27, 0
  %v38 = vsel %vm30, %v28, 0
  %v41 = vsel %vm30, %v29, 0
  %vm43 = vcmask 1043456
  %v45 = vsel %vm43, %v25, 0
  %47 = vmatprep.subr.mxu0 0.0
  %48 = vmatpush1.msra.mxu0 0.0
  %49 = vmatprep.subr.mxu0 0.0
  %50 = vmatpush1.msra.mxu0 0.0
  %51 = vmatprep.subr.mxu0 0.0
  %52 = vmatpush1.msra.mxu0 0.0
  %53 = vmatprep.subr.mxu0 0.0
  %54 = vmatpush1.msra.mxu0 0.0
  %55 = vmatprep.subr.mxu0 0.0
  %56 = vmatpush1.msra.mxu0 0.0
  %57 = vmatprep.subr.mxu0 0.0
  %58 = vmatpush1.msra.mxu0 0.0
  %59 = vmatprep.subr.mxu0 0.0
  %60 = vmatpush1.msra.mxu0 0.0
  %61 = vmatprep.subr.mxu0 0.0
  %62 = vmatpush1.msra.mxu0 0.0
  %63 = vmatprep.subr.mxu0 0.0
  %64 = vmatpush1.msra.mxu0 0.0
  %65 = vmatprep.subr.mxu0 0.0
  %66 = vmatpush1.msra.mxu0 0.0
  %67 = vmatprep.subr.mxu0 0.0
  %68 = vmatpush1.msra.mxu0 0.0
  %69 = vmatprep.subr.mxu0 0.0
  %70 = vmatpush1.msra.mxu0 0.0
  %71 = vmatprep.subr.mxu0 0.0
  %72 = vmatpush1.msra.mxu0 0.0
  %73 = vmatprep.subr.mxu0 0.0
  %74 = vmatpush1.msra.mxu0 0.0
  %75 = vmatprep.subr.mxu0 0.0
  %76 = vmatpush1.msra.mxu0 0.0
  %77 = vmatprep.subr.mxu0 0.0
  %78 = vmatpush1.msra.mxu0 %v45
  %79 = vmatprep.subr.mxu0 0.0
  %80 = vmatpush2.msra.mxu0 0.0
  %81 = vmatprep.subr.mxu0 0.0
  %82 = vmatpush2.msra.mxu0 0.0
  %83 = vmatprep.subr.mxu0 0.0
  %84 = vmatpush2.msra.mxu0 0.0
  %85 = vmatprep.subr.mxu0 0.0
  %86 = vmatpush2.msra.mxu0 0.0
  %87 = vmatprep.subr.mxu0 0.0
  %88 = vmatpush2.msra.mxu0 0.0
  %89 = vmatprep.subr.mxu0 0.0
  %90 = vmatpush2.msra.mxu0 0.0
  %91 = vmatprep.subr.mxu0 0.0
  %92 = vmatpush2.msra.mxu0 0.0
  %93 = vmatprep.subr.mxu0 0.0
  %94 = vmatpush2.msra.mxu0 0.0
  %95 = vmatprep.subr.mxu0 0.0
  %96 = vmatpush2.msra.mxu0 0.0
  %97 = vmatprep.subr.mxu0 0.0
  %98 = vmatpush2.msra.mxu0 0.0
  %99 = vmatprep.subr.mxu0 0.0
  %100 = vmatpush2.msra.mxu0 0.0
  %101 = vmatprep.subr.mxu0 0.0
  %102 = vmatpush2.msra.mxu0 0.0
  %103 = vmatprep.subr.mxu0 0.0
  %104 = vmatpush2.msra.mxu0 0.0
  %105 = vmatprep.subr.mxu0 0.0
  %106 = vmatpush2.msra.mxu0 0.0
  %107 = vmatprep.subr.mxu0 0.0
  %108 = vmatpush2.msra.mxu0 0.0
  %109 = vmatprep.subr.mxu0 0.0
  %110 = vmatpush2.msra.mxu0 0.0
  %111 = vmatprep.mubr.f32.mxu0 0.0
  %112 = vmatmul.mubr.f32.gmra.mxu0 %v32
  %v113 = vpop.f32.mrf.mxu0
  %v114 = vadd.f32 0.0, %v113
  %v115 = vpop.f32.mrf.mxu0
  %116 = vmatprep.mubr.f32.mxu0 0.0
  %117 = vmatmul.mubr.f32.gmra.mxu0 %v35
  %v118 = vpop.f32.mrf.mxu0
  %v119 = vadd.f32 0.0, %v118
  %v120 = vpop.f32.mrf.mxu0
  %121 = vmatprep.mubr.f32.mxu0 0.0
  %122 = vmatmul.mubr.f32.gmra.mxu0 %v38
  %v123 = vpop.f32.mrf.mxu0
  %v124 = vadd.f32 0.0, %v123
  %v125 = vpop.f32.mrf.mxu0
  %126 = vmatprep.mubr.f32.mxu0 0.0
  %127 = vmatmul.mubr.f32.gmra.mxu0 %v41
  %v128 = vpop.f32.mrf.mxu0
  %v129 = vadd.f32 0.0, %v128
  %v130 = vpop.f32.mrf.mxu0
  %131 = vdwg.mxu0
  %v132 = vmax.f32 %v114, 0.0
  %v133 = vmax.f32 %v119, 0.0
  %v134 = vmax.f32 %v124, 0.0
  %v135 = vmax.f32 %v129, 0.0
  %v136 = vld [vmem:[%s2] sm:$0xff]
  %v137 = vld [vmem:[%s2 + $0x8] sm:$0xff]
  %v138 = vld [vmem:[%s2 + $0x10] sm:$0xff]
  %v139 = vld [vmem:[%s2 + $0x18] sm:$0xff]
  %v140 = vld [vmem:[%s3] sm:$0xff]
  %v141 = vld [vmem:[%s3 + $0x8] sm:$0xff]
  %v142 = vld [vmem:[%s3 + $0x10] sm:$0xff]
  %v143 = vld [vmem:[%s3 + $0x18] sm:$0xff]
  %145 = vset.pattern.permute.xlu0 0
  %146 = vperm.xlu0 %145, %v140
  %v147 = vpop.permute.xlu0 %146
  %150 = vset.pattern.permute.xlu0 0
  %151 = vperm.xlu0 %150, %v141
  %v152 = vpop.permute.xlu0 %151
  %155 = vset.pattern.permute.xlu0 0
  %156 = vperm.xlu0 %155, %v142
  %v157 = vpop.permute.xlu0 %156
  %160 = vset.pattern.permute.xlu0 0
  %161 = vperm.xlu0 %160, %v143
  %v162 = vpop.permute.xlu0 %161
  %vm164 = vcmask 261120
  %v166 = vsel %vm164, %v136, 0
  %v169 = vsel %vm164, %v137, 0
  %v172 = vsel %vm164, %v138, 0
  %v175 = vsel %vm164, %v139, 0
  %177 = vmatprep.subr.mxu0 0.0
  %178 = vmatpush1.msra.mxu0 0.0
  %179 = vmatprep.subr.mxu0 0.0
  %180 = vmatpush1.msra.mxu0 0.0
  %181 = vmatprep.subr.mxu0 0.0
  %182 = vmatpush1.msra.mxu0 0.0
  %183 = vmatprep.subr.mxu0 0.0
  %184 = vmatpush1.msra.mxu0 0.0
  %185 = vmatprep.subr.mxu0 0.0
  %186 = vmatpush1.msra.mxu0 0.0
  %187 = vmatprep.subr.mxu0 0.0
  %188 = vmatpush1.msra.mxu0 0.0
  %189 = vmatprep.subr.mxu0 0.0
  %190 = vmatpush1.msra.mxu0 0.0
  %191 = vmatprep.subr.mxu0 0.0
  %192 = vmatpush1.msra.mxu0 0.0
  %193 = vmatprep.subr.mxu0 0.0
  %194 = vmatpush1.msra.mxu0 0.0
  %195 = vmatprep.subr.mxu0 0.0
  %196 = vmatpush1.msra.mxu0 0.0
  %197 = vmatprep.subr.mxu0 0.0
  %198 = vmatpush1.msra.mxu0 0.0
  %199 = vmatprep.subr.mxu0 0.0
  %200 = vmatpush1.msra.mxu0 0.0
  %201 = vmatprep.subr.mxu0 0.0
  %202 = vmatpush1.msra.mxu0 %v135
  %203 = vmatprep.subr.mxu0 0.0
  %204 = vmatpush1.msra.mxu0 %v134
  %205 = vmatprep.subr.mxu0 0.0
  %206 = vmatpush1.msra.mxu0 %v133
  %207 = vmatprep.subr.mxu0 0.0
  %208 = vmatpush1.msra.mxu0 %v132
  %209 = vmatprep.subr.mxu0 0.0
  %210 = vmatpush2.msra.mxu0 0.0
  %211 = vmatprep.subr.mxu0 0.0
  %212 = vmatpush2.msra.mxu0 0.0
  %213 = vmatprep.subr.mxu0 0.0
  %214 = vmatpush2.msra.mxu0 0.0
  %215 = vmatprep.subr.mxu0 0.0
  %216 = vmatpush2.msra.mxu0 0.0
  %217 = vmatprep.subr.mxu0 0.0
  %218 = vmatpush2.msra.mxu0 0.0
  %219 = vmatprep.subr.mxu0 0.0
  %220 = vmatpush2.msra.mxu0 0.0
  %221 = vmatprep.subr.mxu0 0.0
  %222 = vmatpush2.msra.mxu0 0.0
  %223 = vmatprep.subr.mxu0 0.0
  %224 = vmatpush2.msra.mxu0 0.0
  %225 = vmatprep.subr.mxu0 0.0
  %226 = vmatpush2.msra.mxu0 0.0
  %227 = vmatprep.subr.mxu0 0.0
  %228 = vmatpush2.msra.mxu0 0.0
  %229 = vmatprep.subr.mxu0 0.0
  %230 = vmatpush2.msra.mxu0 0.0
  %231 = vmatprep.subr.mxu0 0.0
  %232 = vmatpush2.msra.mxu0 0.0
  %233 = vmatprep.subr.mxu0 0.0
  %234 = vmatpush2.msra.mxu0 0.0
  %235 = vmatprep.subr.mxu0 0.0
  %236 = vmatpush2.msra.mxu0 0.0
  %237 = vmatprep.subr.mxu0 0.0
  %238 = vmatpush2.msra.mxu0 0.0
  %239 = vmatprep.subr.mxu0 0.0
  %240 = vmatpush2.msra.mxu0 0.0
  %241 = vmatprep.mubr.f32.mxu0 0.0
  %242 = vmatmul.mubr.f32.gmra.mxu0 %v166
  %v243 = vpop.f32.mrf.mxu0
  %v244 = vadd.f32 %v147, %v243
  %v245 = vpop.f32.mrf.mxu0
  %246 = vmatprep.mubr.f32.mxu0 0.0
  %247 = vmatmul.mubr.f32.gmra.mxu0 %v169
  %v248 = vpop.f32.mrf.mxu0
  %v249 = vadd.f32 %v152, %v248
  %v250 = vpop.f32.mrf.mxu0
  %251 = vmatprep.mubr.f32.mxu0 0.0
  %252 = vmatmul.mubr.f32.gmra.mxu0 %v172
  %v253 = vpop.f32.mrf.mxu0
  %v254 = vadd.f32 %v157, %v253
  %v255 = vpop.f32.mrf.mxu0
  %256 = vmatprep.mubr.f32.mxu0 0.0
  %257 = vmatmul.mubr.f32.gmra.mxu0 %v175
  %v258 = vpop.f32.mrf.mxu0
  %v259 = vadd.f32 %v162, %v258
  %v260 = vpop.f32.mrf.mxu0
  %261 = vdwg.mxu0
  %v262 = vmax.f32 %v244, 0.0
  %v263 = vmax.f32 %v249, 0.0
  %v264 = vmax.f32 %v254, 0.0
  %v265 = vmax.f32 %v259, 0.0
  %v266 = vld [vmem:[%s4] sm:$0x1]
  %v267 = vld [vmem:[#allocation2] sm:$0x1]
  %269 = vset.pattern.permute.xlu0 0
  %270 = vperm.xlu0 %269, %v267
  %v271 = vpop.permute.xlu0 %270
  %v273 = vlaneseq
  %v274 = vshrl.u32 %v273, 7
  %v275 = vsub.s32 0, %v274
  %v276 = vrot.slane %v271, %v275
  %v278 = vsel %vm164, %v266, 0
  %280 = vmatprep.subr.mxu0 0.0
  %281 = vmatpush1.msra.mxu0 0.0
  %282 = vmatprep.subr.mxu0 0.0
  %283 = vmatpush1.msra.mxu0 0.0
  %284 = vmatprep.subr.mxu0 0.0
  %285 = vmatpush1.msra.mxu0 0.0
  %286 = vmatprep.subr.mxu0 0.0
  %287 = vmatpush1.msra.mxu0 0.0
  %288 = vmatprep.subr.mxu0 0.0
  %289 = vmatpush1.msra.mxu0 0.0
  %290 = vmatprep.subr.mxu0 0.0
  %291 = vmatpush1.msra.mxu0 0.0
  %292 = vmatprep.subr.mxu0 0.0
  %293 = vmatpush1.msra.mxu0 0.0
  %294 = vmatprep.subr.mxu0 0.0
  %295 = vmatpush1.msra.mxu0 0.0
  %296 = vmatprep.subr.mxu0 0.0
  %297 = vmatpush1.msra.mxu0 0.0
  %298 = vmatprep.subr.mxu0 0.0
  %299 = vmatpush1.msra.mxu0 0.0
  %300 = vmatprep.subr.mxu0 0.0
  %301 = vmatpush1.msra.mxu0 0.0
  %302 = vmatprep.subr.mxu0 0.0
  %303 = vmatpush1.msra.mxu0 0.0
  %304 = vmatprep.subr.mxu0 0.0
  %305 = vmatpush1.msra.mxu0 %v265
  %306 = vmatprep.subr.mxu0 0.0
  %307 = vmatpush1.msra.mxu0 %v264
  %308 = vmatprep.subr.mxu0 0.0
  %309 = vmatpush1.msra.mxu0 %v263
  %310 = vmatprep.subr.mxu0 0.0
  %311 = vmatpush1.msra.mxu0 %v262
  %312 = vmatprep.subr.mxu0 0.0
  %313 = vmatpush2.msra.mxu0 0.0
  %314 = vmatprep.subr.mxu0 0.0
  %315 = vmatpush2.msra.mxu0 0.0
  %316 = vmatprep.subr.mxu0 0.0
  %317 = vmatpush2.msra.mxu0 0.0
  %318 = vmatprep.subr.mxu0 0.0
  %319 = vmatpush2.msra.mxu0 0.0
  %320 = vmatprep.subr.mxu0 0.0
  %321 = vmatpush2.msra.mxu0 0.0
  %322 = vmatprep.subr.mxu0 0.0
  %323 = vmatpush2.msra.mxu0 0.0
  %324 = vmatprep.subr.mxu0 0.0
  %325 = vmatpush2.msra.mxu0 0.0
  %326 = vmatprep.subr.mxu0 0.0
  %327 = vmatpush2.msra.mxu0 0.0
  %328 = vmatprep.subr.mxu0 0.0
  %329 = vmatpush2.msra.mxu0 0.0
  %330 = vmatprep.subr.mxu0 0.0
  %331 = vmatpush2.msra.mxu0 0.0
  %332 = vmatprep.subr.mxu0 0.0
  %333 = vmatpush2.msra.mxu0 0.0
  %334 = vmatprep.subr.mxu0 0.0
  %335 = vmatpush2.msra.mxu0 0.0
  %336 = vmatprep.subr.mxu0 0.0
  %337 = vmatpush2.msra.mxu0 0.0
  %338 = vmatprep.subr.mxu0 0.0
  %339 = vmatpush2.msra.mxu0 0.0
  %340 = vmatprep.subr.mxu0 0.0
  %341 = vmatpush2.msra.mxu0 0.0
  %342 = vmatprep.subr.mxu0 0.0
  %343 = vmatpush2.msra.mxu0 0.0
  %344 = vmatprep.mubr.f32.mxu0 0.0
  %345 = vmatmul.mubr.f32.gmra.mxu0 %v278
  %v346 = vpop.f32.mrf.mxu0
  %v347 = vadd.f32 %v276, %v346
  %v348 = vpop.f32.mrf.mxu0
  %349 = vdwg.mxu0
  %350 = vst [vmem:[%s6] sm:$0x1] %v347
  // Predicated region
  $region26: #{net_forward.1} parent=0 // pred_check
    _
  $region27: #{net_forward.1} parent=0 // pred_check_branch
    %352 = sbr.rel (0) target = $region29
  $region28: #{net_forward.1} parent=0 // pred_region
    _
  $region29: #{net_forward.1} parent=0 // pred_fallthru
    _
  // Predicated region
  $region30: #{net_forward.1} parent=0 // pred_check
    _
  $region31: #{net_forward.1} parent=0 // pred_check_branch
    %354 = sbr.rel (0) target = $region33
  $region32: #{net_forward.1} parent=0 // pred_region
    _
  $region33: #{net_forward.1} parent=0 // pred_fallthru
    _

</llo_original>
